<compile_context>
chip_gen: v7x
topology: tpu7x:2x2x1
jax: 0.10.0
libtpu: 0.0.40
codegen_flags: <defaults>
</compile_context>

<pallas_src>
import math
import functools

import jax
import jax.numpy as jnp
from jax.experimental import pallas as pl
from jax.experimental.pallas import tpu as pltpu


_BLOCK_B = 128   # batch tile (M dimension of the MXU matmuls)
_LANE = 128      # lane-dense padding for the Q-value output


def _mlp_kernel(x_ref, w1_ref, b1_ref, w2_ref, b2_ref, w3_ref, b3_ref,
                q_ref, a_ref, *, obs_dim, n_actions):
    """One batch tile of the 3-layer MLP, fully VMEM-resident."""
    x = x_ref[...]                                              # (TB, obs) f32

    # ---- Layer 1: Linear + ReLU -----------------------------------------
    if obs_dim <= 16:
        # K is tiny: 4-term broadcast-FMA on the VPU; keeps the MXU free.
        h1 = x[:, 0:1] * w1_ref[0:1, :]
        for k in range(1, obs_dim):
            h1 = h1 + x[:, k:k + 1] * w1_ref[k:k + 1, :]
    else:
        h1 = jnp.dot(x.astype(jnp.bfloat16),
                     w1_ref[...].astype(jnp.bfloat16),
                     preferred_element_type=jnp.float32)
    h1 = jnp.maximum(h1 + b1_ref[...], 0.0)                     # (TB, 128) f32

    # ---- Layer 2: Linear + Sigmoid (bf16 MXU operands, f32 accumulate) ---
    h2 = jnp.dot(h1.astype(jnp.bfloat16), w2_ref[...],
                 preferred_element_type=jnp.float32) + b2_ref[...]
    h2 = pl.reciprocal(1.0 + jnp.exp(-h2), approx=True)         # sigmoid, EUP

    # ---- Layer 3: Linear (Q-values), lane-dense padded output ------------
    q = jnp.dot(h2.astype(jnp.bfloat16), w3_ref[...],
                preferred_element_type=jnp.float32) + b3_ref[...]
    q_ref[...] = q                                              # (TB, 128) f32

    # ---- Fused argmax over the real action lanes (choose_action path) ----
    n_pad = q.shape[-1]
    lane = jax.lax.broadcasted_iota(jnp.int32, q.shape, 1)
    qm = jnp.where(lane < n_actions, q, jnp.float32(-3.4e38))   # mask padding
    qmax = jnp.max(qm, axis=1, keepdims=True)
    idx = jnp.where(qm == qmax, lane.astype(jnp.float32), jnp.float32(n_pad))
    a_ref[...] = jnp.min(idx, axis=1, keepdims=True).astype(jnp.int32)


@jax.jit
def dqn_forward(x, w1, b1, w2, b2, w3, b3):
    """Returns (q_values[batch, n_actions], best_action[batch] int32)."""
    batch, obs_dim = x.shape
    hidden = w1.shape[1]
    n_actions = w3.shape[1]

    block_b = _BLOCK_B
    n_pad = max(_LANE, pl.cdiv(n_actions, _LANE) * _LANE)
    padded_b = pl.cdiv(batch, block_b) * block_b

    # Pad batch up to the batch tile (rows sliced off afterwards).
    if padded_b != batch:
        x = jnp.pad(x, ((0, padded_b - batch), (0, 0)))

    # Lane-dense output: zero-pad the last layer to n_pad columns.
    w3p = jnp.pad(w3, ((0, 0), (0, n_pad - n_actions))).astype(jnp.bfloat16)
    b3p = jnp.pad(b3, ((0, 0), (0, n_pad - n_actions)))

    # bf16 operands for the MXU (weights DMA'd once, stay resident).
    w2b = w2.astype(jnp.bfloat16)

    kernel = functools.partial(_mlp_kernel, obs_dim=obs_dim,
                               n_actions=n_actions)

    q_pad, act = pl.pallas_call(
        kernel,
        out_shape=(
            jax.ShapeDtypeStruct((padded_b, n_pad), jnp.float32),
            jax.ShapeDtypeStruct((padded_b, 1), jnp.int32),
        ),
        grid=(padded_b // block_b,),
        in_specs=[
            pl.BlockSpec((block_b, obs_dim), lambda i: (i, 0)),   # x streams
            pl.BlockSpec((obs_dim, hidden), lambda i: (0, 0)),    # w1 resident
            pl.BlockSpec((1, hidden), lambda i: (0, 0)),          # b1 resident
            pl.BlockSpec((hidden, hidden), lambda i: (0, 0)),     # w2 resident
            pl.BlockSpec((1, hidden), lambda i: (0, 0)),          # b2 resident
            pl.BlockSpec((hidden, n_pad), lambda i: (0, 0)),      # w3 resident
            pl.BlockSpec((1, n_pad), lambda i: (0, 0)),           # b3 resident
        ],
        out_specs=[
            pl.BlockSpec((block_b, n_pad), lambda i: (i, 0)),     # Q stream
            pl.BlockSpec((block_b, 1), lambda i: (i, 0)),         # argmax stream
        ],
        compiler_params=pltpu.CompilerParams(
            dimension_semantics=("parallel",)),
    )(x, w1, b1, w2b, b2, w3p, b3p)

    return q_pad[:batch, :n_actions], act[:batch, 0]


def init_params(key, obs_dim, hidden, n_actions):
    """PyTorch nn.Linear default init: U(-1/sqrt(fan_in), 1/sqrt(fan_in))."""
    def linear_init(k, fan_in, fan_out):
        kw, kb = jax.random.split(k)
        bound = 1.0 / math.sqrt(fan_in)
        w = jax.random.uniform(kw, (fan_in, fan_out), jnp.float32, -bound, bound)
        b = jax.random.uniform(kb, (1, fan_out), jnp.float32, -bound, bound)
        return w, b

    k1, k2, k3 = jax.random.split(key, 3)
    w1, b1 = linear_init(k1, obs_dim, hidden)
    w2, b2 = linear_init(k2, hidden, hidden)
    w3, b3 = linear_init(k3, hidden, n_actions)
    return w1, b1, w2, b2, w3, b3


def reference_forward(x, w1, b1, w2, b2, w3, b3):
    """Pure-f32 JAX reference matching the PyTorch module."""
    h1 = jnp.maximum(x @ w1 + b1, 0.0)
    h2 = jax.nn.sigmoid(h1 @ w2 + b2)
    return h2 @ w3 + b3


if __name__ == "__main__":
    # CartPole-like shapes: obs_dim=4, 2 actions.
    obs_dim, hidden, n_actions = 4, 128, 2

    key = jax.random.PRNGKey(0)
    kx, kp, ks = jax.random.split(key, 3)
    params = init_params(kp, obs_dim, hidden, n_actions)

    # Replay-buffer style batch: fills the MXU M dimension and exercises the
    # pipelined batch grid (2 tiles of 128).
    batch = 256
    x = jax.random.normal(kx, (batch, obs_dim), jnp.float32)
    q, act = dqn_forward(x, *params)
    q, act = jax.block_until_ready((q, act))

    q_ref = reference_forward(x, *params)
    assert q.shape == (batch, n_actions)
    # bf16 MXU operands + approx-reciprocal sigmoid => loose-ish tolerance.
    assert jnp.allclose(q, q_ref, atol=3e-2, rtol=3e-2), "Q mismatch vs reference"
    assert jnp.all(act == jnp.argmax(q, axis=1)), "fused argmax mismatch"

    # choose_action equivalent: single state, argmax fused into the kernel
    # (one dispatch; batch padded internally to the 128-row tile).
    state = jax.random.normal(ks, (obs_dim,), jnp.float32)
    q1, a1 = dqn_forward(state[None, :], *params)
    q1, a1 = jax.block_until_ready((q1, a1))
    best_action = int(a1[0])
    assert best_action == int(jnp.argmax(q1[0]))

    print("KERNEL_OK")
</pallas_src>

<mosaic_0001>
module attributes {stable_mosaic.version = 11 : i64} {
  func.func @_mlp_kernel(%arg0: i32, %arg1: memref<128x4xf32, #tpu.memory_space<vmem>>, %arg2: memref<4x128xf32, #tpu.memory_space<vmem>>, %arg3: memref<1x128xf32, #tpu.memory_space<vmem>>, %arg4: memref<128x128xbf16, #tpu.memory_space<vmem>>, %arg5: memref<1x128xf32, #tpu.memory_space<vmem>>, %arg6: memref<128x128xbf16, #tpu.memory_space<vmem>>, %arg7: memref<1x128xf32, #tpu.memory_space<vmem>>, %arg8: memref<128x128xf32, #tpu.memory_space<vmem>>, %arg9: memref<128x1xi32, #tpu.memory_space<vmem>>) attributes {dimension_semantics = [#tpu.dimension_semantics<parallel>], iteration_bounds = array<i64: 2>, scalar_prefetch = 0 : i64, scratch_operands = 0 : i64, tpu.core_type = #tpu.core_type<tc>, window_params = [{transform_indices = @transform_0, window_bounds = array<i64: 128, 4>}, {pipeline_mode = #tpu.pipeline_mode<synchronous>, transform_indices = @transform_1, window_bounds = array<i64: 4, 128>}, {pipeline_mode = #tpu.pipeline_mode<synchronous>, transform_indices = @transform_2, window_bounds = array<i64: 1, 128>}, {pipeline_mode = #tpu.pipeline_mode<synchronous>, transform_indices = @transform_3, window_bounds = array<i64: 128, 128>}, {pipeline_mode = #tpu.pipeline_mode<synchronous>, transform_indices = @transform_4, window_bounds = array<i64: 1, 128>}, {pipeline_mode = #tpu.pipeline_mode<synchronous>, transform_indices = @transform_5, window_bounds = array<i64: 128, 128>}, {pipeline_mode = #tpu.pipeline_mode<synchronous>, transform_indices = @transform_6, window_bounds = array<i64: 1, 128>}, {transform_indices = @transform_7, window_bounds = array<i64: 128, 128>}, {transform_indices = @transform_8, window_bounds = array<i64: 128, 1>}]} {
    %c0 = arith.constant 0 : index
    %c0_0 = arith.constant 0 : index
    %0 = vector.load %arg1[%c0, %c0_0] : memref<128x4xf32, #tpu.memory_space<vmem>>, vector<128x4xf32>
    %1 = vector.extract_strided_slice %0 {offsets = [0, 0], sizes = [128, 1], strides = [1, 1]} : vector<128x4xf32> to vector<128x1xf32>
    %c0_1 = arith.constant 0 : index
    %c0_2 = arith.constant 0 : index
    %2 = vector.load %arg2[%c0_1, %c0_2] : memref<4x128xf32, #tpu.memory_space<vmem>>, vector<1x128xf32>
    %3 = vector.broadcast %1 : vector<128x1xf32> to vector<128x128xf32>
    %4 = vector.broadcast %2 : vector<1x128xf32> to vector<128x128xf32>
    %5 = arith.mulf %3, %4 : vector<128x128xf32>
    %6 = vector.extract_strided_slice %0 {offsets = [0, 1], sizes = [128, 1], strides = [1, 1]} : vector<128x4xf32> to vector<128x1xf32>
    %c1 = arith.constant 1 : index
    %c0_3 = arith.constant 0 : index
    %7 = vector.load %arg2[%c1, %c0_3] : memref<4x128xf32, #tpu.memory_space<vmem>>, vector<1x128xf32>
    %8 = vector.broadcast %6 : vector<128x1xf32> to vector<128x128xf32>
    %9 = vector.broadcast %7 : vector<1x128xf32> to vector<128x128xf32>
    %10 = arith.mulf %8, %9 : vector<128x128xf32>
    %11 = arith.addf %5, %10 : vector<128x128xf32>
    %12 = vector.extract_strided_slice %0 {offsets = [0, 2], sizes = [128, 1], strides = [1, 1]} : vector<128x4xf32> to vector<128x1xf32>
    %c2 = arith.constant 2 : index
    %c0_4 = arith.constant 0 : index
    %13 = vector.load %arg2[%c2, %c0_4] : memref<4x128xf32, #tpu.memory_space<vmem>>, vector<1x128xf32>
    %14 = vector.broadcast %12 : vector<128x1xf32> to vector<128x128xf32>
    %15 = vector.broadcast %13 : vector<1x128xf32> to vector<128x128xf32>
    %16 = arith.mulf %14, %15 : vector<128x128xf32>
    %17 = arith.addf %11, %16 : vector<128x128xf32>
    %18 = vector.extract_strided_slice %0 {offsets = [0, 3], sizes = [128, 1], strides = [1, 1]} : vector<128x4xf32> to vector<128x1xf32>
    %c3 = arith.constant 3 : index
    %c0_5 = arith.constant 0 : index
    %19 = vector.load %arg2[%c3, %c0_5] : memref<4x128xf32, #tpu.memory_space<vmem>>, vector<1x128xf32>
    %20 = vector.broadcast %18 : vector<128x1xf32> to vector<128x128xf32>
    %21 = vector.broadcast %19 : vector<1x128xf32> to vector<128x128xf32>
    %22 = arith.mulf %20, %21 : vector<128x128xf32>
    %23 = arith.addf %17, %22 : vector<128x128xf32>
    %c0_6 = arith.constant 0 : index
    %c0_7 = arith.constant 0 : index
    %24 = vector.load %arg3[%c0_6, %c0_7] : memref<1x128xf32, #tpu.memory_space<vmem>>, vector<1x128xf32>
    %25 = vector.broadcast %24 : vector<1x128xf32> to vector<128x128xf32>
    %26 = arith.addf %23, %25 : vector<128x128xf32>
    %cst = arith.constant 0.000000e+00 : f32
    %27 = vector.broadcast %cst : f32 to vector<128x128xf32>
    %28 = arith.maximumf %26, %27 : vector<128x128xf32>
    %29 = arith.truncf %28 : vector<128x128xf32> to vector<128x128xbf16>
    %c0_8 = arith.constant 0 : index
    %c0_9 = arith.constant 0 : index
    %30 = vector.load %arg4[%c0_8, %c0_9] : memref<128x128xbf16, #tpu.memory_space<vmem>>, vector<128x128xbf16>
    %cst_10 = arith.constant dense<0.000000e+00> : vector<128x128xf32>
    %31 = tpu.matmul %29, %30, %cst_10 {dimension_numbers = #tpu.dot_dimension_numbers<[1], [0], [0], [1], [0, 0, 1, 1], [], []>} : vector<128x128xbf16>, vector<128x128xbf16>, vector<128x128xf32> -> vector<128x128xf32>
    %c0_11 = arith.constant 0 : index
    %c0_12 = arith.constant 0 : index
    %32 = vector.load %arg5[%c0_11, %c0_12] : memref<1x128xf32, #tpu.memory_space<vmem>>, vector<1x128xf32>
    %33 = vector.broadcast %32 : vector<1x128xf32> to vector<128x128xf32>
    %34 = arith.addf %31, %33 : vector<128x128xf32>
    %cst_13 = arith.constant 0.000000e+00 : f32
    %35 = vector.broadcast %cst_13 : f32 to vector<128x128xf32>
    %36 = arith.subf %35, %34 : vector<128x128xf32>
    %37 = math.exp %36 : vector<128x128xf32>
    %cst_14 = arith.constant 1.000000e+00 : f32
    %38 = vector.broadcast %cst_14 : f32 to vector<128x128xf32>
    %39 = arith.addf %38, %37 : vector<128x128xf32>
    %40 = tpu.reciprocal %39 {approx = true} : vector<128x128xf32> -> vector<128x128xf32>
    %41 = arith.truncf %40 : vector<128x128xf32> to vector<128x128xbf16>
    %c0_15 = arith.constant 0 : index
    %c0_16 = arith.constant 0 : index
    %42 = vector.load %arg6[%c0_15, %c0_16] : memref<128x128xbf16, #tpu.memory_space<vmem>>, vector<128x128xbf16>
    %cst_17 = arith.constant dense<0.000000e+00> : vector<128x128xf32>
    %43 = tpu.matmul %41, %42, %cst_17 {dimension_numbers = #tpu.dot_dimension_numbers<[1], [0], [0], [1], [0, 0, 1, 1], [], []>} : vector<128x128xbf16>, vector<128x128xbf16>, vector<128x128xf32> -> vector<128x128xf32>
    %c0_18 = arith.constant 0 : index
    %c0_19 = arith.constant 0 : index
    %44 = vector.load %arg7[%c0_18, %c0_19] : memref<1x128xf32, #tpu.memory_space<vmem>>, vector<1x128xf32>
    %45 = vector.broadcast %44 : vector<1x128xf32> to vector<128x128xf32>
    %46 = arith.addf %43, %45 : vector<128x128xf32>
    %c0_20 = arith.constant 0 : index
    %c0_21 = arith.constant 0 : index
    %47 = vector.load %arg8[%c0_20, %c0_21] : memref<128x128xf32, #tpu.memory_space<vmem>>, vector<128x128xf32>
    tpu.vector_store %arg8[%c0_20, %c0_21], %46 {strides = array<i32>} : memref<128x128xf32, #tpu.memory_space<vmem>>, vector<128x128xf32>,
    %48 = tpu.iota {dimensions = array<i32: 1>} : vector<128x128xi32>
    %c2_i32 = arith.constant 2 : i32
    %49 = vector.broadcast %c2_i32 : i32 to vector<128x128xi32>
    %50 = arith.cmpi slt, %48, %49 : vector<128x128xi32>
    %cst_22 = arith.constant -3.400000e+38 : f32
    %51 = vector.broadcast %cst_22 : f32 to vector<128x128xf32>
    %52 = arith.select %50, %46, %51 : vector<128x128xi1>, vector<128x128xf32>
    %cst_23 = arith.constant dense<0xFF800000> : vector<128xf32>
    %53 = vector.multi_reduction <maximumf>, %52, %cst_23 [1] : vector<128x128xf32> to vector<128xf32>
    %54 = vector.shape_cast %53 : vector<128xf32> to vector<128x1xf32>
    %55 = vector.broadcast %54 : vector<128x1xf32> to vector<128x128xf32>
    %56 = arith.cmpf oeq, %52, %55 : vector<128x128xf32>
    %57 = arith.sitofp %48 : vector<128x128xi32> to vector<128x128xf32>
    %cst_24 = arith.constant 1.280000e+02 : f32
    %58 = vector.broadcast %cst_24 : f32 to vector<128x128xf32>
    %59 = arith.select %56, %57, %58 : vector<128x128xi1>, vector<128x128xf32>
    %cst_25 = arith.constant dense<0x7F800000> : vector<128xf32>
    %60 = vector.multi_reduction <minimumf>, %59, %cst_25 [1] : vector<128x128xf32> to vector<128xf32>
    %61 = vector.shape_cast %60 : vector<128xf32> to vector<128x1xf32>
    %62 = arith.fptosi %61 : vector<128x1xf32> to vector<128x1xi32>
    %c0_26 = arith.constant 0 : index
    %c0_27 = arith.constant 0 : index
    %63 = vector.load %arg9[%c0_26, %c0_27] : memref<128x1xi32, #tpu.memory_space<vmem>>, vector<128x1xi32>
    tpu.vector_store %arg9[%c0_26, %c0_27], %62 {strides = array<i32>} : memref<128x1xi32, #tpu.memory_space<vmem>>, vector<128x1xi32>,
    return
  }
  func.func @transform_0(%arg0: i32) -> (i32, i32) {
    %c0_i32 = arith.constant 0 : i32
    %c0_i32_0 = arith.constant 0 : i32
    return %arg0, %c0_i32 : i32, i32
  }
  func.func @transform_1(%arg0: i32) -> (i32, i32) {
    %c0_i32 = arith.constant 0 : i32
    %c0_i32_0 = arith.constant 0 : i32
    %c0_i32_1 = arith.constant 0 : i32
    return %c0_i32, %c0_i32_0 : i32, i32
  }
  func.func @transform_2(%arg0: i32) -> (i32, i32) {
    %c0_i32 = arith.constant 0 : i32
    %c0_i32_0 = arith.constant 0 : i32
    %c0_i32_1 = arith.constant 0 : i32
    return %c0_i32, %c0_i32_0 : i32, i32
  }
  func.func @transform_3(%arg0: i32) -> (i32, i32) {
    %c0_i32 = arith.constant 0 : i32
    %c0_i32_0 = arith.constant 0 : i32
    %c0_i32_1 = arith.constant 0 : i32
    return %c0_i32, %c0_i32_0 : i32, i32
  }
  func.func @transform_4(%arg0: i32) -> (i32, i32) {
    %c0_i32 = arith.constant 0 : i32
    %c0_i32_0 = arith.constant 0 : i32
    %c0_i32_1 = arith.constant 0 : i32
    return %c0_i32, %c0_i32_0 : i32, i32
  }
  func.func @transform_5(%arg0: i32) -> (i32, i32) {
    %c0_i32 = arith.constant 0 : i32
    %c0_i32_0 = arith.constant 0 : i32
    %c0_i32_1 = arith.constant 0 : i32
    return %c0_i32, %c0_i32_0 : i32, i32
  }
  func.func @transform_6(%arg0: i32) -> (i32, i32) {
    %c0_i32 = arith.constant 0 : i32
    %c0_i32_0 = arith.constant 0 : i32
    %c0_i32_1 = arith.constant 0 : i32
    return %c0_i32, %c0_i32_0 : i32, i32
  }
  func.func @transform_7(%arg0: i32) -> (i32, i32) {
    %c0_i32 = arith.constant 0 : i32
    %c0_i32_0 = arith.constant 0 : i32
    return %arg0, %c0_i32 : i32, i32
  }
  func.func @transform_8(%arg0: i32) -> (i32, i32) {
    %c0_i32 = arith.constant 0 : i32
    %c0_i32_0 = arith.constant 0 : i32
    return %arg0, %c0_i32 : i32, i32
  }
}

</mosaic_0001>

<llo_original>
// kernel: dqn_forward.1
$region0: #{dqn_forward.1}
  #allocation0 [shape = 'u32[]', space=smem, size = 0x4, offset = 0x4, fixed_abs, tag = 'smem constant byte address 0x4 - core index']
  #allocation1 [shape = 'u32[144,128]{1,0:T(1,128)}', space=vmem, size = 0x12000, scoped, tag = 'internal scratch']
  %s0 = inlined_call_operand.vmem [shape: f32[256,4], index: 0, kind: input, shape index: {}]
  %s1 = inlined_call_operand.vmem [shape: f32[4,128], index: 1, kind: input, shape index: {}]
  %s2 = inlined_call_operand.vmem [shape: f32[1,128], index: 2, kind: input, shape index: {}]
  %s3 = inlined_call_operand.vmem [shape: bf16[128,128], index: 3, kind: input, shape index: {}]
  %s4 = inlined_call_operand.vmem [shape: f32[1,128], index: 4, kind: input, shape index: {}]
  %s5 = inlined_call_operand.vmem [shape: bf16[128,128], index: 5, kind: input, shape index: {}]
  %s6 = inlined_call_operand.vmem [shape: f32[1,128], index: 6, kind: input, shape index: {}]
  %s7 = inlined_call_operand.vmem [shape: f32[256,128], index: 7, kind: output, shape index: {0}]
  %s8 = inlined_call_operand.vmem [shape: s32[256,1], index: 8, kind: output, shape index: {1}]
  %9 = xla_tuple %s7, %s8
  %s10 = sld [smem:[#allocation0]]
  $region69: #{dqn_forward.1} parent=0
    _
  %s12 = ssub.s32 1, %s10
  %s13 = scalar_select 0, %s12, %s10
  loop: start=0, step=1, limit=4
  $region2: #{dqn_forward.1} parent=0 // loop_pre_header
    _
  $region3: #{dqn_forward.1} parent=0 // loop_header
    %s15 = sphi 0, %s19
    %p16 = scmp.ge.s32.totalorder %s15, 4
    %s25 = sphi 0, %s27
    %s28 = sphi 0, %s25
    %s29 = sphi 0, %s28
    %s45 = sphi 0, %s29
    %s49 = sphi 0, %s49
    %s51 = sphi 0, %s49
    %s52 = sphi 0, %s51
    %s66 = sphi 0, %s52
    %s70 = sphi 0, %s70
    %s72 = sphi 0, %s70
    %s73 = sphi 0, %s72
    %s87 = sphi 0, %s73
    %s91 = sphi 0, %s91
    %s93 = sphi 0, %s91
    %s94 = sphi 0, %s93
    %s108 = sphi 0, %s94
    %s112 = sphi 0, %s112
    %s114 = sphi 0, %s112
    %s115 = sphi 0, %s114
    %s129 = sphi 0, %s115
    %s133 = sphi 0, %s133
    %s135 = sphi 0, %s133
    %s136 = sphi 0, %s135
    %s150 = sphi 0, %s136
    %s154 = sphi 0, %s154
    %s156 = sphi 0, %s154
    %s157 = sphi 0, %s156
    %s171 = sphi 0, %s157
    %s177 = sphi 0, %s179
    %s180 = sphi 0, %s177
    %s181 = sphi 0, %s180
    %s197 = sphi 0, %s181
    %s203 = sphi 0, %s205
    %s206 = sphi 0, %s203
    %s207 = sphi 0, %s206
    %s223 = sphi 0, %s207
  $region4: #{dqn_forward.1} parent=0 // loop_header_branch
    %18 = sbr.rel (%p16) target = $region8
  $region5: #{dqn_forward.1} parent=0 // loop_body
    %s20 = ssub.s32 %s15, 1
    %s21 = ssub.s32 %s15, 2
    %s22 = sadd.s32 %s15, 1
    %s23 = ssub.s32 %s15, %s22
    %p24 = scmp.eq.s32.totalorder %s23, 0
    %s26 = sadd.s32 %s25, 1
    %s27 = scalar_select %p24, %s25, %s26
    %p30 = pneg %p24
    %p31 = scmp.eq.s32.totalorder %s15, 1
    %p32 = por %p30, %p31
    %p33 = scmp.ne.s32.totalorder %s25, %s28
    %p34 = scmp.eq.s32.totalorder %s15, 0
    %p35 = por %p33, %p34
    %p36 = scmp.ne.s32.totalorder %s25, %s28
    %p37 = scmp.eq.s32.totalorder %s20, 1
    %p38 = por %p36, %p37
    %p39 = scmp.ne.s32.totalorder %s28, %s29
    %p40 = scmp.eq.s32.totalorder %s20, 0
    %p41 = por %p39, %p40
    %p42 = scmp.ne.s32.totalorder %s28, %s29
    %p43 = scmp.eq.s32.totalorder %s21, 1
    %p44 = por %p42, %p43
    %p46 = scmp.ne.s32.totalorder %s29, %s45
    %p47 = scmp.eq.s32.totalorder %s21, 0
    %p48 = por %p46, %p47
    %s50 = sadd.s32 %s49, 1
    %p53 = scmp.eq.s32.totalorder %s15, 1
    %p54 = scmp.ne.s32.totalorder %s49, %s51
    %p55 = scmp.eq.s32.totalorder %s15, 0
    %p56 = por %p54, %p55
    %p57 = scmp.ne.s32.totalorder %s49, %s51
    %p58 = scmp.eq.s32.totalorder %s20, 1
    %p59 = por %p57, %p58
    %p60 = scmp.ne.s32.totalorder %s51, %s52
    %p61 = scmp.eq.s32.totalorder %s20, 0
    %p62 = por %p60, %p61
    %p63 = scmp.ne.s32.totalorder %s51, %s52
    %p64 = scmp.eq.s32.totalorder %s21, 1
    %p65 = por %p63, %p64
    %p67 = scmp.ne.s32.totalorder %s52, %s66
    %p68 = scmp.eq.s32.totalorder %s21, 0
    %p69 = por %p67, %p68
    %s71 = sadd.s32 %s70, 1
    %p74 = scmp.eq.s32.totalorder %s15, 1
    %p75 = scmp.ne.s32.totalorder %s70, %s72
    %p76 = scmp.eq.s32.totalorder %s15, 0
    %p77 = por %p75, %p76
    %p78 = scmp.ne.s32.totalorder %s70, %s72
    %p79 = scmp.eq.s32.totalorder %s20, 1
    %p80 = por %p78, %p79
    %p81 = scmp.ne.s32.totalorder %s72, %s73
    %p82 = scmp.eq.s32.totalorder %s20, 0
    %p83 = por %p81, %p82
    %p84 = scmp.ne.s32.totalorder %s72, %s73
    %p85 = scmp.eq.s32.totalorder %s21, 1
    %p86 = por %p84, %p85
    %p88 = scmp.ne.s32.totalorder %s73, %s87
    %p89 = scmp.eq.s32.totalorder %s21, 0
    %p90 = por %p88, %p89
    %s92 = sadd.s32 %s91, 1
    %p95 = scmp.eq.s32.totalorder %s15, 1
    %p96 = scmp.ne.s32.totalorder %s91, %s93
    %p97 = scmp.eq.s32.totalorder %s15, 0
    %p98 = por %p96, %p97
    %p99 = scmp.ne.s32.totalorder %s91, %s93
    %p100 = scmp.eq.s32.totalorder %s20, 1
    %p101 = por %p99, %p100
    %p102 = scmp.ne.s32.totalorder %s93, %s94
    %p103 = scmp.eq.s32.totalorder %s20, 0
    %p104 = por %p102, %p103
    %p105 = scmp.ne.s32.totalorder %s93, %s94
    %p106 = scmp.eq.s32.totalorder %s21, 1
    %p107 = por %p105, %p106
    %p109 = scmp.ne.s32.totalorder %s94, %s108
    %p110 = scmp.eq.s32.totalorder %s21, 0
    %p111 = por %p109, %p110
    %s113 = sadd.s32 %s112, 1
    %p116 = scmp.eq.s32.totalorder %s15, 1
    %p117 = scmp.ne.s32.totalorder %s112, %s114
    %p118 = scmp.eq.s32.totalorder %s15, 0
    %p119 = por %p117, %p118
    %p120 = scmp.ne.s32.totalorder %s112, %s114
    %p121 = scmp.eq.s32.totalorder %s20, 1
    %p122 = por %p120, %p121
    %p123 = scmp.ne.s32.totalorder %s114, %s115
    %p124 = scmp.eq.s32.totalorder %s20, 0
    %p125 = por %p123, %p124
    %p126 = scmp.ne.s32.totalorder %s114, %s115
    %p127 = scmp.eq.s32.totalorder %s21, 1
    %p128 = por %p126, %p127
    %p130 = scmp.ne.s32.totalorder %s115, %s129
    %p131 = scmp.eq.s32.totalorder %s21, 0
    %p132 = por %p130, %p131
    %s134 = sadd.s32 %s133, 1
    %p137 = scmp.eq.s32.totalorder %s15, 1
    %p138 = scmp.ne.s32.totalorder %s133, %s135
    %p139 = scmp.eq.s32.totalorder %s15, 0
    %p140 = por %p138, %p139
    %p141 = scmp.ne.s32.totalorder %s133, %s135
    %p142 = scmp.eq.s32.totalorder %s20, 1
    %p143 = por %p141, %p142
    %p144 = scmp.ne.s32.totalorder %s135, %s136
    %p145 = scmp.eq.s32.totalorder %s20, 0
    %p146 = por %p144, %p145
    %p147 = scmp.ne.s32.totalorder %s135, %s136
    %p148 = scmp.eq.s32.totalorder %s21, 1
    %p149 = por %p147, %p148
    %p151 = scmp.ne.s32.totalorder %s136, %s150
    %p152 = scmp.eq.s32.totalorder %s21, 0
    %p153 = por %p151, %p152
    %s155 = sadd.s32 %s154, 1
    %p158 = scmp.eq.s32.totalorder %s15, 1
    %p159 = scmp.ne.s32.totalorder %s154, %s156
    %p160 = scmp.eq.s32.totalorder %s15, 0
    %p161 = por %p159, %p160
    %p162 = scmp.ne.s32.totalorder %s154, %s156
    %p163 = scmp.eq.s32.totalorder %s20, 1
    %p164 = por %p162, %p163
    %p165 = scmp.ne.s32.totalorder %s156, %s157
    %p166 = scmp.eq.s32.totalorder %s20, 0
    %p167 = por %p165, %p166
    %p168 = scmp.ne.s32.totalorder %s156, %s157
    %p169 = scmp.eq.s32.totalorder %s21, 1
    %p170 = por %p168, %p169
    %p172 = scmp.ne.s32.totalorder %s157, %s171
    %p173 = scmp.eq.s32.totalorder %s21, 0
    %p174 = por %p172, %p173
    %s175 = ssub.s32 %s15, %s22
    %p176 = scmp.eq.s32.totalorder %s175, 0
    %s178 = sadd.s32 %s177, 1
    %s179 = scalar_select %p176, %s177, %s178
    %p182 = pneg %p176
    %p183 = scmp.eq.s32.totalorder %s15, 1
    %p184 = por %p182, %p183
    %p185 = scmp.ne.s32.totalorder %s177, %s180
    %p186 = scmp.eq.s32.totalorder %s15, 0
    %p187 = por %p185, %p186
    %p188 = scmp.ne.s32.totalorder %s177, %s180
    %p189 = scmp.eq.s32.totalorder %s20, 1
    %p190 = por %p188, %p189
    %p191 = scmp.ne.s32.totalorder %s180, %s181
    %p192 = scmp.eq.s32.totalorder %s20, 0
    %p193 = por %p191, %p192
    %p194 = scmp.ne.s32.totalorder %s180, %s181
    %p195 = scmp.eq.s32.totalorder %s21, 1
    %p196 = por %p194, %p195
    %p198 = scmp.ne.s32.totalorder %s181, %s197
    %p199 = scmp.eq.s32.totalorder %s21, 0
    %p200 = por %p198, %p199
    %s201 = ssub.s32 %s15, %s22
    %p202 = scmp.eq.s32.totalorder %s201, 0
    %s204 = sadd.s32 %s203, 1
    %s205 = scalar_select %p202, %s203, %s204
    %p208 = pneg %p202
    %p209 = scmp.eq.s32.totalorder %s15, 1
    %p210 = por %p208, %p209
    %p211 = scmp.ne.s32.totalorder %s203, %s206
    %p212 = scmp.eq.s32.totalorder %s15, 0
    %p213 = por %p211, %p212
    %p214 = scmp.ne.s32.totalorder %s203, %s206
    %p215 = scmp.eq.s32.totalorder %s20, 1
    %p216 = por %p214, %p215
    %p217 = scmp.ne.s32.totalorder %s206, %s207
    %p218 = scmp.eq.s32.totalorder %s20, 0
    %p219 = por %p217, %p218
    %p220 = scmp.ne.s32.totalorder %s206, %s207
    %p221 = scmp.eq.s32.totalorder %s21, 1
    %p222 = por %p220, %p221
    %p224 = scmp.ne.s32.totalorder %s207, %s223
    %p225 = scmp.eq.s32.totalorder %s21, 0
    %p226 = por %p224, %p225
    %p227 = scmp.le.s32.totalorder 1, %s15
    %p228 = scmp.lt.s32.totalorder %s15, 3
    %p229 = pnand %p227, %p228
    %p230 = pneg %p229
    // Predicated region
    $region9: #{dqn_forward.1} parent=5 // pred_check
      _
    $region10: #{dqn_forward.1} parent=5 // pred_check_branch
      %232 = sbr.rel (%p229) target = $region12
    $region11: #{dqn_forward.1} parent=5 // pred_region
      %s233 = ssub.s32 %s15, 1
      // Predicated region
      $region13: #{dqn_forward.1} parent=11 // pred_check
        %p234 = pneg %p62
      $region14: #{dqn_forward.1} parent=11 // pred_check_branch
        %236 = sbr.rel (%p234) target = $region16
      $region15: #{dqn_forward.1} parent=11 // pred_region
        _
      $region16: #{dqn_forward.1} parent=11 // pred_fallthru
        _
      // Predicated region
      $region17: #{dqn_forward.1} parent=11 // pred_check
        %p237 = pneg %p83
      $region18: #{dqn_forward.1} parent=11 // pred_check_branch
        %239 = sbr.rel (%p237) target = $region20
      $region19: #{dqn_forward.1} parent=11 // pred_region
        _
      $region20: #{dqn_forward.1} parent=11 // pred_fallthru
        _
      // Predicated region
      $region21: #{dqn_forward.1} parent=11 // pred_check
        %p240 = pneg %p104
      $region22: #{dqn_forward.1} parent=11 // pred_check_branch
        %242 = sbr.rel (%p240) target = $region24
      $region23: #{dqn_forward.1} parent=11 // pred_region
        _
      $region24: #{dqn_forward.1} parent=11 // pred_fallthru
        _
      // Predicated region
      $region25: #{dqn_forward.1} parent=11 // pred_check
        %p243 = pneg %p125
      $region26: #{dqn_forward.1} parent=11 // pred_check_branch
        %245 = sbr.rel (%p243) target = $region28
      $region27: #{dqn_forward.1} parent=11 // pred_region
        _
      $region28: #{dqn_forward.1} parent=11 // pred_fallthru
        _
      // Predicated region
      $region29: #{dqn_forward.1} parent=11 // pred_check
        %p246 = pneg %p146
      $region30: #{dqn_forward.1} parent=11 // pred_check_branch
        %248 = sbr.rel (%p246) target = $region32
      $region31: #{dqn_forward.1} parent=11 // pred_region
        _
      $region32: #{dqn_forward.1} parent=11 // pred_fallthru
        _
      // Predicated region
      $region33: #{dqn_forward.1} parent=11 // pred_check
        %p249 = pneg %p167
      $region34: #{dqn_forward.1} parent=11 // pred_check_branch
        %251 = sbr.rel (%p249) target = $region36
      $region35: #{dqn_forward.1} parent=11 // pred_region
        _
      $region36: #{dqn_forward.1} parent=11 // pred_fallthru
        _
    $region12: #{dqn_forward.1} parent=5 // pred_fallthru
      _
    %p252 = scmp.lt.s32.totalorder %s15, 2
    // Predicated region
    $region37: #{dqn_forward.1} parent=5 // pred_check
      %p253 = pneg %p252
    $region38: #{dqn_forward.1} parent=5 // pred_check_branch
      %255 = sbr.rel (%p253) target = $region40
    $region39: #{dqn_forward.1} parent=5 // pred_region
      // Predicated region
      $region41: #{dqn_forward.1} parent=39 // pred_check
        %p256 = pneg %p35
      $region42: #{dqn_forward.1} parent=39 // pred_check_branch
        %258 = sbr.rel (%p256) target = $region44
      $region43: #{dqn_forward.1} parent=39 // pred_region
        %s259 = smul.u32 16, %s15
        %p260 = scmp.lt.s32.totalorder %s259, 31
        %s261 = scalar_select %p260, %s259, 31
        %s262 = smul.addr %s261, 8
        %s263 = scalar_lea.vmem %s0, %s262
        %s264 = smul.u32 16, %s15
      $region44: #{dqn_forward.1} parent=39 // pred_fallthru
        _
    $region40: #{dqn_forward.1} parent=5 // pred_fallthru
      _
    %p265 = scmp.le.s32.totalorder 1, %s15
    %p266 = scmp.lt.s32.totalorder %s15, 3
    %p267 = pnand %p265, %p266
    %p268 = pneg %p267
    // Predicated region
    $region45: #{dqn_forward.1} parent=5 // pred_check
      _
    $region46: #{dqn_forward.1} parent=5 // pred_check_branch
      %270 = sbr.rel (%p267) target = $region48
    $region47: #{dqn_forward.1} parent=5 // pred_region
      %s271 = ssub.s32 %s15, 1
      %s272 = smul.u32 16, %s20
      %p273 = scmp.lt.s32.totalorder %s272, 31
      %s274 = scalar_select %p273, %s272, 31
      %s275 = smul.addr %s274, 8
      %s276 = scalar_lea.vmem %s0, %s275
      %p277 = pneg %p41
      %p278 = pneg %p38
      %p279 = pneg %p62
      %p280 = pneg %p59
      %p281 = pneg %p83
      %p282 = pneg %p80
      %p283 = pneg %p104
      %p284 = pneg %p101
      %p285 = pneg %p125
      %p286 = pneg %p122
      %p287 = pneg %p146
      %p288 = pneg %p143
      %p289 = pneg %p167
      %p290 = pneg %p164
      %p291 = pneg %p193
      %p292 = pneg %p190
      %s293 = smul.u32 16, %s20
      %p294 = scmp.lt.s32.totalorder %s293, 31
      %s295 = scalar_select %p294, %s293, 31
      %s296 = smul.addr %s295, 8
      %s297 = scalar_lea.vmem %s7, %s296
      %p298 = pneg %p219
      %p299 = pneg %p216
      %s300 = smul.u32 16, %s20
      %p301 = scmp.lt.s32.totalorder %s300, 31
      %s302 = scalar_select %p301, %s300, 31
      %s303 = smul.addr %s302, 8
      %s304 = scalar_lea.vmem %s8, %s303
      %s305 = smul.u32 16, %s20
      %p306 = scmp.lt.s32.totalorder %s305, 31
      %s307 = scalar_select %p306, %s305, 31
      %s308 = smul.addr %s307, 8
      %s309 = scalar_lea.vmem %s0, %s308
      %s310 = smul.u32 16, %s20
      %s311 = smul.u32 16, %s20
      %p312 = scmp.lt.s32.totalorder %s311, 31
      %s313 = scalar_select %p312, %s311, 31
      %s314 = smul.addr %s313, 8
      %s315 = scalar_lea.vmem %s7, %s314
      %s316 = smul.u32 16, %s20
      %s317 = smul.u32 16, %s20
      %p318 = scmp.lt.s32.totalorder %s317, 31
      %s319 = scalar_select %p318, %s317, 31
      %s320 = smul.addr %s319, 8
      %s321 = scalar_lea.vmem %s8, %s320
      %s322 = smul.u32 16, %s20
      %v324 = vld [vmem:[%s309] sm:$0xff]
      %v325 = vld [vmem:[%s309 + $0x8] sm:$0xff]
      %v326 = vld [vmem:[%s309 + $0x10] sm:$0xff]
      %v327 = vld [vmem:[%s309 + $0x18] sm:$0xff]
      %v328 = vld [vmem:[%s309 + $0x20] sm:$0xff]
      %v329 = vld [vmem:[%s309 + $0x28] sm:$0xff]
      %v330 = vld [vmem:[%s309 + $0x30] sm:$0xff]
      %v331 = vld [vmem:[%s309 + $0x38] sm:$0xff]
      %v332 = vld [vmem:[%s309 + $0x40] sm:$0xff]
      %v333 = vld [vmem:[%s309 + $0x48] sm:$0xff]
      %v334 = vld [vmem:[%s309 + $0x50] sm:$0xff]
      %v335 = vld [vmem:[%s309 + $0x58] sm:$0xff]
      %v336 = vld [vmem:[%s309 + $0x60] sm:$0xff]
      %v337 = vld [vmem:[%s309 + $0x68] sm:$0xff]
      %v338 = vld [vmem:[%s309 + $0x70] sm:$0xff]
      %v339 = vld [vmem:[%s309 + $0x78] sm:$0xff]
      %v340 = vld [vmem:[%s1] sm:$0x1]
      %342 = vset.pattern.permute.xlu0 0
      %343 = vperm.xlu0 %342, %v324
      %v344 = vpop.permute.xlu0 %343
      %347 = vset.pattern.permute.xlu0 0
      %348 = vperm.xlu0 %347, %v325
      %v349 = vpop.permute.xlu0 %348
      %352 = vset.pattern.permute.xlu0 0
      %353 = vperm.xlu0 %352, %v326
      %v354 = vpop.permute.xlu0 %353
      %357 = vset.pattern.permute.xlu0 0
      %358 = vperm.xlu0 %357, %v327
      %v359 = vpop.permute.xlu0 %358
      %362 = vset.pattern.permute.xlu0 0
      %363 = vperm.xlu0 %362, %v328
      %v364 = vpop.permute.xlu0 %363
      %367 = vset.pattern.permute.xlu0 0
      %368 = vperm.xlu0 %367, %v329
      %v369 = vpop.permute.xlu0 %368
      %372 = vset.pattern.permute.xlu0 0
      %373 = vperm.xlu0 %372, %v330
      %v374 = vpop.permute.xlu0 %373
      %377 = vset.pattern.permute.xlu0 0
      %378 = vperm.xlu0 %377, %v331
      %v379 = vpop.permute.xlu0 %378
      %382 = vset.pattern.permute.xlu0 0
      %383 = vperm.xlu0 %382, %v332
      %v384 = vpop.permute.xlu0 %383
      %387 = vset.pattern.permute.xlu0 0
      %388 = vperm.xlu0 %387, %v333
      %v389 = vpop.permute.xlu0 %388
      %392 = vset.pattern.permute.xlu0 0
      %393 = vperm.xlu0 %392, %v334
      %v394 = vpop.permute.xlu0 %393
      %397 = vset.pattern.permute.xlu0 0
      %398 = vperm.xlu0 %397, %v335
      %v399 = vpop.permute.xlu0 %398
      %402 = vset.pattern.permute.xlu0 0
      %403 = vperm.xlu0 %402, %v336
      %v404 = vpop.permute.xlu0 %403
      %407 = vset.pattern.permute.xlu0 0
      %408 = vperm.xlu0 %407, %v337
      %v409 = vpop.permute.xlu0 %408
      %412 = vset.pattern.permute.xlu0 0
      %413 = vperm.xlu0 %412, %v338
      %v414 = vpop.permute.xlu0 %413
      %417 = vset.pattern.permute.xlu0 0
      %418 = vperm.xlu0 %417, %v339
      %v419 = vpop.permute.xlu0 %418
      %v421 = vlaneseq
      %v422 = vshrl.u32 %v421, 7
      %v423 = vsub.s32 0, %v422
      %v424 = vrot.slane %v340, %v423
      %v425 = vmul.f32 %v344, %v424
      %v426 = vmul.f32 %v349, %v424
      %v427 = vmul.f32 %v354, %v424
      %v428 = vmul.f32 %v359, %v424
      %v429 = vmul.f32 %v364, %v424
      %v430 = vmul.f32 %v369, %v424
      %v431 = vmul.f32 %v374, %v424
      %v432 = vmul.f32 %v379, %v424
      %v433 = vmul.f32 %v384, %v424
      %v434 = vmul.f32 %v389, %v424
      %v435 = vmul.f32 %v394, %v424
      %v436 = vmul.f32 %v399, %v424
      %v437 = vmul.f32 %v404, %v424
      %v438 = vmul.f32 %v409, %v424
      %v439 = vmul.f32 %v414, %v424
      %v440 = vmul.f32 %v419, %v424
      %v441 = vld [vmem:[%s1 + $0x1] sm:$0x1]
      %442 = vset.pattern.permute.xlu0 1
      %443 = vperm.xlu0 %442, %v324
      %v444 = vpop.permute.xlu0 %443
      %446 = vset.pattern.permute.xlu0 1
      %447 = vperm.xlu0 %446, %v325
      %v448 = vpop.permute.xlu0 %447
      %450 = vset.pattern.permute.xlu0 1
      %451 = vperm.xlu0 %450, %v326
      %v452 = vpop.permute.xlu0 %451
      %454 = vset.pattern.permute.xlu0 1
      %455 = vperm.xlu0 %454, %v327
      %v456 = vpop.permute.xlu0 %455
      %458 = vset.pattern.permute.xlu0 1
      %459 = vperm.xlu0 %458, %v328
      %v460 = vpop.permute.xlu0 %459
      %462 = vset.pattern.permute.xlu0 1
      %463 = vperm.xlu0 %462, %v329
      %v464 = vpop.permute.xlu0 %463
      %466 = vset.pattern.permute.xlu0 1
      %467 = vperm.xlu0 %466, %v330
      %v468 = vpop.permute.xlu0 %467
      %470 = vset.pattern.permute.xlu0 1
      %471 = vperm.xlu0 %470, %v331
      %v472 = vpop.permute.xlu0 %471
      %474 = vset.pattern.permute.xlu0 1
      %475 = vperm.xlu0 %474, %v332
      %v476 = vpop.permute.xlu0 %475
      %478 = vset.pattern.permute.xlu0 1
      %479 = vperm.xlu0 %478, %v333
      %v480 = vpop.permute.xlu0 %479
      %482 = vset.pattern.permute.xlu0 1
      %483 = vperm.xlu0 %482, %v334
      %v484 = vpop.permute.xlu0 %483
      %486 = vset.pattern.permute.xlu0 1
      %487 = vperm.xlu0 %486, %v335
      %v488 = vpop.permute.xlu0 %487
      %490 = vset.pattern.permute.xlu0 1
      %491 = vperm.xlu0 %490, %v336
      %v492 = vpop.permute.xlu0 %491
      %494 = vset.pattern.permute.xlu0 1
      %495 = vperm.xlu0 %494, %v337
      %v496 = vpop.permute.xlu0 %495
      %498 = vset.pattern.permute.xlu0 1
      %499 = vperm.xlu0 %498, %v338
      %v500 = vpop.permute.xlu0 %499
      %502 = vset.pattern.permute.xlu0 1
      %503 = vperm.xlu0 %502, %v339
      %v504 = vpop.permute.xlu0 %503
      %v506 = vlaneseq
      %v507 = vshrl.u32 %v506, 7
      %v508 = vsub.s32 0, %v507
      %v509 = vrot.slane %v441, %v508
      %v510 = vmul.f32 %v444, %v509
      %v511 = vmul.f32 %v448, %v509
      %v512 = vmul.f32 %v452, %v509
      %v513 = vmul.f32 %v456, %v509
      %v514 = vmul.f32 %v460, %v509
      %v515 = vmul.f32 %v464, %v509
      %v516 = vmul.f32 %v468, %v509
      %v517 = vmul.f32 %v472, %v509
      %v518 = vmul.f32 %v476, %v509
      %v519 = vmul.f32 %v480, %v509
      %v520 = vmul.f32 %v484, %v509
      %v521 = vmul.f32 %v488, %v509
      %v522 = vmul.f32 %v492, %v509
      %v523 = vmul.f32 %v496, %v509
      %v524 = vmul.f32 %v500, %v509
      %v525 = vmul.f32 %v504, %v509
      %v526 = vadd.f32 %v425, %v510
      %v527 = vadd.f32 %v426, %v511
      %v528 = vadd.f32 %v427, %v512
      %v529 = vadd.f32 %v428, %v513
      %v530 = vadd.f32 %v429, %v514
      %v531 = vadd.f32 %v430, %v515
      %v532 = vadd.f32 %v431, %v516
      %v533 = vadd.f32 %v432, %v517
      %v534 = vadd.f32 %v433, %v518
      %v535 = vadd.f32 %v434, %v519
      %v536 = vadd.f32 %v435, %v520
      %v537 = vadd.f32 %v436, %v521
      %v538 = vadd.f32 %v437, %v522
      %v539 = vadd.f32 %v438, %v523
      %v540 = vadd.f32 %v439, %v524
      %v541 = vadd.f32 %v440, %v525
      %v542 = vld [vmem:[%s1 + $0x2] sm:$0x1]
      %543 = vset.pattern.permute.xlu0 2
      %544 = vperm.xlu0 %543, %v324
      %v545 = vpop.permute.xlu0 %544
      %547 = vset.pattern.permute.xlu0 2
      %548 = vperm.xlu0 %547, %v325
      %v549 = vpop.permute.xlu0 %548
      %551 = vset.pattern.permute.xlu0 2
      %552 = vperm.xlu0 %551, %v326
      %v553 = vpop.permute.xlu0 %552
      %555 = vset.pattern.permute.xlu0 2
      %556 = vperm.xlu0 %555, %v327
      %v557 = vpop.permute.xlu0 %556
      %559 = vset.pattern.permute.xlu0 2
      %560 = vperm.xlu0 %559, %v328
      %v561 = vpop.permute.xlu0 %560
      %563 = vset.pattern.permute.xlu0 2
      %564 = vperm.xlu0 %563, %v329
      %v565 = vpop.permute.xlu0 %564
      %567 = vset.pattern.permute.xlu0 2
      %568 = vperm.xlu0 %567, %v330
      %v569 = vpop.permute.xlu0 %568
      %571 = vset.pattern.permute.xlu0 2
      %572 = vperm.xlu0 %571, %v331
      %v573 = vpop.permute.xlu0 %572
      %575 = vset.pattern.permute.xlu0 2
      %576 = vperm.xlu0 %575, %v332
      %v577 = vpop.permute.xlu0 %576
      %579 = vset.pattern.permute.xlu0 2
      %580 = vperm.xlu0 %579, %v333
      %v581 = vpop.permute.xlu0 %580
      %583 = vset.pattern.permute.xlu0 2
      %584 = vperm.xlu0 %583, %v334
      %v585 = vpop.permute.xlu0 %584
      %587 = vset.pattern.permute.xlu0 2
      %588 = vperm.xlu0 %587, %v335
      %v589 = vpop.permute.xlu0 %588
      %591 = vset.pattern.permute.xlu0 2
      %592 = vperm.xlu0 %591, %v336
      %v593 = vpop.permute.xlu0 %592
      %595 = vset.pattern.permute.xlu0 2
      %596 = vperm.xlu0 %595, %v337
      %v597 = vpop.permute.xlu0 %596
      %599 = vset.pattern.permute.xlu0 2
      %600 = vperm.xlu0 %599, %v338
      %v601 = vpop.permute.xlu0 %600
      %603 = vset.pattern.permute.xlu0 2
      %604 = vperm.xlu0 %603, %v339
      %v605 = vpop.permute.xlu0 %604
      %v607 = vlaneseq
      %v608 = vshrl.u32 %v607, 7
      %v609 = vsub.s32 0, %v608
      %v610 = vrot.slane %v542, %v609
      %v611 = vmul.f32 %v545, %v610
      %v612 = vmul.f32 %v549, %v610
      %v613 = vmul.f32 %v553, %v610
      %v614 = vmul.f32 %v557, %v610
      %v615 = vmul.f32 %v561, %v610
      %v616 = vmul.f32 %v565, %v610
      %v617 = vmul.f32 %v569, %v610
      %v618 = vmul.f32 %v573, %v610
      %v619 = vmul.f32 %v577, %v610
      %v620 = vmul.f32 %v581, %v610
      %v621 = vmul.f32 %v585, %v610
      %v622 = vmul.f32 %v589, %v610
      %v623 = vmul.f32 %v593, %v610
      %v624 = vmul.f32 %v597, %v610
      %v625 = vmul.f32 %v601, %v610
      %v626 = vmul.f32 %v605, %v610
      %v627 = vadd.f32 %v526, %v611
      %v628 = vadd.f32 %v527, %v612
      %v629 = vadd.f32 %v528, %v613
      %v630 = vadd.f32 %v529, %v614
      %v631 = vadd.f32 %v530, %v615
      %v632 = vadd.f32 %v531, %v616
      %v633 = vadd.f32 %v532, %v617
      %v634 = vadd.f32 %v533, %v618
      %v635 = vadd.f32 %v534, %v619
      %v636 = vadd.f32 %v535, %v620
      %v637 = vadd.f32 %v536, %v621
      %v638 = vadd.f32 %v537, %v622
      %v639 = vadd.f32 %v538, %v623
      %v640 = vadd.f32 %v539, %v624
      %v641 = vadd.f32 %v540, %v625
      %v642 = vadd.f32 %v541, %v626
      %v643 = vld [vmem:[%s1 + $0x3] sm:$0x1]
      %644 = vset.pattern.permute.xlu0 3
      %645 = vperm.xlu0 %644, %v324
      %v646 = vpop.permute.xlu0 %645
      %648 = vset.pattern.permute.xlu0 3
      %649 = vperm.xlu0 %648, %v325
      %v650 = vpop.permute.xlu0 %649
      %652 = vset.pattern.permute.xlu0 3
      %653 = vperm.xlu0 %652, %v326
      %v654 = vpop.permute.xlu0 %653
      %656 = vset.pattern.permute.xlu0 3
      %657 = vperm.xlu0 %656, %v327
      %v658 = vpop.permute.xlu0 %657
      %660 = vset.pattern.permute.xlu0 3
      %661 = vperm.xlu0 %660, %v328
      %v662 = vpop.permute.xlu0 %661
      %664 = vset.pattern.permute.xlu0 3
      %665 = vperm.xlu0 %664, %v329
      %v666 = vpop.permute.xlu0 %665
      %668 = vset.pattern.permute.xlu0 3
      %669 = vperm.xlu0 %668, %v330
      %v670 = vpop.permute.xlu0 %669
      %672 = vset.pattern.permute.xlu0 3
      %673 = vperm.xlu0 %672, %v331
      %v674 = vpop.permute.xlu0 %673
      %676 = vset.pattern.permute.xlu0 3
      %677 = vperm.xlu0 %676, %v332
      %v678 = vpop.permute.xlu0 %677
      %680 = vset.pattern.permute.xlu0 3
      %681 = vperm.xlu0 %680, %v333
      %v682 = vpop.permute.xlu0 %681
      %684 = vset.pattern.permute.xlu0 3
      %685 = vperm.xlu0 %684, %v334
      %v686 = vpop.permute.xlu0 %685
      %688 = vset.pattern.permute.xlu0 3
      %689 = vperm.xlu0 %688, %v335
      %v690 = vpop.permute.xlu0 %689
      %692 = vset.pattern.permute.xlu0 3
      %693 = vperm.xlu0 %692, %v336
      %v694 = vpop.permute.xlu0 %693
      %696 = vset.pattern.permute.xlu0 3
      %697 = vperm.xlu0 %696, %v337
      %v698 = vpop.permute.xlu0 %697
      %700 = vset.pattern.permute.xlu0 3
      %701 = vperm.xlu0 %700, %v338
      %v702 = vpop.permute.xlu0 %701
      %704 = vset.pattern.permute.xlu0 3
      %705 = vperm.xlu0 %704, %v339
      %v706 = vpop.permute.xlu0 %705
      %v708 = vlaneseq
      %v709 = vshrl.u32 %v708, 7
      %v710 = vsub.s32 0, %v709
      %v711 = vrot.slane %v643, %v710
      %v712 = vmul.f32 %v646, %v711
      %v713 = vmul.f32 %v650, %v711
      %v714 = vmul.f32 %v654, %v711
      %v715 = vmul.f32 %v658, %v711
      %v716 = vmul.f32 %v662, %v711
      %v717 = vmul.f32 %v666, %v711
      %v718 = vmul.f32 %v670, %v711
      %v719 = vmul.f32 %v674, %v711
      %v720 = vmul.f32 %v678, %v711
      %v721 = vmul.f32 %v682, %v711
      %v722 = vmul.f32 %v686, %v711
      %v723 = vmul.f32 %v690, %v711
      %v724 = vmul.f32 %v694, %v711
      %v725 = vmul.f32 %v698, %v711
      %v726 = vmul.f32 %v702, %v711
      %v727 = vmul.f32 %v706, %v711
      %v728 = vadd.f32 %v627, %v712
      %v729 = vadd.f32 %v628, %v713
      %v730 = vadd.f32 %v629, %v714
      %v731 = vadd.f32 %v630, %v715
      %v732 = vadd.f32 %v631, %v716
      %v733 = vadd.f32 %v632, %v717
      %v734 = vadd.f32 %v633, %v718
      %v735 = vadd.f32 %v634, %v719
      %v736 = vadd.f32 %v635, %v720
      %v737 = vadd.f32 %v636, %v721
      %v738 = vadd.f32 %v637, %v722
      %v739 = vadd.f32 %v638, %v723
      %v740 = vadd.f32 %v639, %v724
      %v741 = vadd.f32 %v640, %v725
      %v742 = vadd.f32 %v641, %v726
      %v743 = vadd.f32 %v642, %v727
      %v744 = vld [vmem:[%s2] sm:$0x1]
      %v746 = vlaneseq
      %v747 = vshrl.u32 %v746, 7
      %v748 = vsub.s32 0, %v747
      %v749 = vrot.slane %v744, %v748
      %v751 = vadd.f32 %v728, %v749
      %v752 = vadd.f32 %v729, %v749
      %v753 = vadd.f32 %v730, %v749
      %v754 = vadd.f32 %v731, %v749
      %v755 = vadd.f32 %v732, %v749
      %v756 = vadd.f32 %v733, %v749
      %v757 = vadd.f32 %v734, %v749
      %v758 = vadd.f32 %v735, %v749
      %v759 = vadd.f32 %v736, %v749
      %v760 = vadd.f32 %v737, %v749
      %v761 = vadd.f32 %v738, %v749
      %v762 = vadd.f32 %v739, %v749
      %v763 = vadd.f32 %v740, %v749
      %v764 = vadd.f32 %v741, %v749
      %v765 = vadd.f32 %v742, %v749
      %v766 = vadd.f32 %v743, %v749
      %v767 = vmax.f32 %v751, 0.0
      %v768 = vmax.f32 %v752, 0.0
      %v769 = vmax.f32 %v753, 0.0
      %v770 = vmax.f32 %v754, 0.0
      %v771 = vmax.f32 %v755, 0.0
      %v772 = vmax.f32 %v756, 0.0
      %v773 = vmax.f32 %v757, 0.0
      %v774 = vmax.f32 %v758, 0.0
      %v775 = vmax.f32 %v759, 0.0
      %v776 = vmax.f32 %v760, 0.0
      %v777 = vmax.f32 %v761, 0.0
      %v778 = vmax.f32 %v762, 0.0
      %v779 = vmax.f32 %v763, 0.0
      %v780 = vmax.f32 %v764, 0.0
      %v781 = vmax.f32 %v765, 0.0
      %v782 = vmax.f32 %v766, 0.0
      %v783 = vpack.c.bf16 %v768, %v767
      %v784 = vpack.c.bf16 %v770, %v769
      %v785 = vpack.c.bf16 %v772, %v771
      %v786 = vpack.c.bf16 %v774, %v773
      %v787 = vpack.c.bf16 %v776, %v775
      %v788 = vpack.c.bf16 %v778, %v777
      %v789 = vpack.c.bf16 %v780, %v779
      %v790 = vpack.c.bf16 %v782, %v781
      %v791 = vld [vmem:[%s3] sm:$0xf]
      %v792 = vld [vmem:[%s3 + $0x4] sm:$0xf]
      %v793 = vld [vmem:[%s3 + $0x8] sm:$0xf]
      %v794 = vld [vmem:[%s3 + $0xc] sm:$0xf]
      %v795 = vld [vmem:[%s3 + $0x10] sm:$0xf]
      %v796 = vld [vmem:[%s3 + $0x14] sm:$0xf]
      %v797 = vld [vmem:[%s3 + $0x18] sm:$0xf]
      %v798 = vld [vmem:[%s3 + $0x1c] sm:$0xf]
      %v799 = vld [vmem:[%s3 + $0x20] sm:$0xf]
      %v800 = vld [vmem:[%s3 + $0x24] sm:$0xf]
      %v801 = vld [vmem:[%s3 + $0x28] sm:$0xf]
      %v802 = vld [vmem:[%s3 + $0x2c] sm:$0xf]
      %v803 = vld [vmem:[%s3 + $0x30] sm:$0xf]
      %v804 = vld [vmem:[%s3 + $0x34] sm:$0xf]
      %v805 = vld [vmem:[%s3 + $0x38] sm:$0xf]
      %v806 = vld [vmem:[%s3 + $0x3c] sm:$0xf]
      %v807 = vld [vmem:[%s4] sm:$0x1]
      %v809 = vlaneseq
      %v810 = vshrl.u32 %v809, 7
      %v811 = vsub.s32 0, %v810
      %v812 = vrot.slane %v807, %v811
      %v830 = vunpack.c.l.b16 %v791
      %v831 = vunpack.c.l.b16 %v792
      %v832 = vunpack.c.l.b16 %v793
      %v833 = vunpack.c.l.b16 %v794
      %v834 = vunpack.c.l.b16 %v795
      %v835 = vunpack.c.l.b16 %v796
      %v836 = vunpack.c.l.b16 %v797
      %v837 = vunpack.c.l.b16 %v798
      %v838 = vunpack.c.l.b16 %v799
      %v839 = vunpack.c.l.b16 %v800
      %v840 = vunpack.c.l.b16 %v801
      %v841 = vunpack.c.l.b16 %v802
      %v842 = vunpack.c.l.b16 %v803
      %v843 = vunpack.c.l.b16 %v804
      %v844 = vunpack.c.l.b16 %v805
      %v845 = vunpack.c.l.b16 %v806
      %v846 = vpack.c.b16 %v831, %v830
      %v847 = vpack.c.b16 %v833, %v832
      %v848 = vpack.c.b16 %v835, %v834
      %v849 = vpack.c.b16 %v837, %v836
      %v850 = vpack.c.b16 %v839, %v838
      %v851 = vpack.c.b16 %v841, %v840
      %v852 = vpack.c.b16 %v843, %v842
      %v853 = vpack.c.b16 %v845, %v844
      %862 = vmatprep.subr.bf16.mxu0 0
      %863 = vmatpush1.bf16.msra.mxu0 %v846
      %864 = vmatprep.subr.bf16.mxu0 0
      %865 = vmatpush1.bf16.msra.mxu0 %v847
      %866 = vmatprep.subr.bf16.mxu0 0
      %867 = vmatpush1.bf16.msra.mxu0 %v848
      %868 = vmatprep.subr.bf16.mxu0 0
      %869 = vmatpush1.bf16.msra.mxu0 %v849
      %870 = vmatprep.subr.bf16.mxu0 0
      %871 = vmatpush1.bf16.msra.mxu0 %v850
      %872 = vmatprep.subr.bf16.mxu0 0
      %873 = vmatpush1.bf16.msra.mxu0 %v851
      %874 = vmatprep.subr.bf16.mxu0 0
      %875 = vmatpush1.bf16.msra.mxu0 %v852
      %876 = vmatprep.subr.bf16.mxu0 0
      %877 = vmatpush1.bf16.msra.mxu0 %v853
      %878 = vmatprep.subr.bf16.mxu0 0
      %879 = vmatpush1.bf16.msra.mxu0 0
      %880 = vmatprep.subr.bf16.mxu0 0
      %881 = vmatpush1.bf16.msra.mxu0 0
      %882 = vmatprep.subr.bf16.mxu0 0
      %883 = vmatpush1.bf16.msra.mxu0 0
      %884 = vmatprep.subr.bf16.mxu0 0
      %885 = vmatpush1.bf16.msra.mxu0 0
      %886 = vmatprep.subr.bf16.mxu0 0
      %887 = vmatpush1.bf16.msra.mxu0 0
      %888 = vmatprep.subr.bf16.mxu0 0
      %889 = vmatpush1.bf16.msra.mxu0 0
      %890 = vmatprep.subr.bf16.mxu0 0
      %891 = vmatpush1.bf16.msra.mxu0 0
      %892 = vmatprep.subr.bf16.mxu0 0
      %893 = vmatpush1.bf16.msra.mxu0 0
      %894 = vmatprep.mubr.bf16.mxu0 0
      %895 = vmatmul.mubr.bf16.gmra.mrb[0].mxu0 %v783
      %v896 = vpop.f32.mrb[0].mxu0
      %v897 = vadd.f32 %v812, %v896
      %v898 = vpop.f32.mrb[0].mxu0
      %v899 = vpop.f32.mrb[0].mxu0
      %v900 = vadd.f32 %v812, %v899
      %v901 = vpop.f32.mrb[0].mxu0
      %902 = vmatprep.mubr.bf16.mxu0 0
      %903 = vmatmul.mubr.bf16.gmra.mrb[0].mxu0 %v784
      %v904 = vpop.f32.mrb[0].mxu0
      %v905 = vadd.f32 %v812, %v904
      %v906 = vpop.f32.mrb[0].mxu0
      %v907 = vpop.f32.mrb[0].mxu0
      %v908 = vadd.f32 %v812, %v907
      %v909 = vpop.f32.mrb[0].mxu0
      %910 = vmatprep.mubr.bf16.mxu0 0
      %911 = vmatmul.mubr.bf16.gmra.mrb[0].mxu0 %v785
      %v912 = vpop.f32.mrb[0].mxu0
      %v913 = vadd.f32 %v812, %v912
      %v914 = vpop.f32.mrb[0].mxu0
      %v915 = vpop.f32.mrb[0].mxu0
      %v916 = vadd.f32 %v812, %v915
      %v917 = vpop.f32.mrb[0].mxu0
      %918 = vmatprep.mubr.bf16.mxu0 0
      %919 = vmatmul.mubr.bf16.gmra.mrb[0].mxu0 %v786
      %v920 = vpop.f32.mrb[0].mxu0
      %v921 = vadd.f32 %v812, %v920
      %v922 = vpop.f32.mrb[0].mxu0
      %v923 = vpop.f32.mrb[0].mxu0
      %v924 = vadd.f32 %v812, %v923
      %v925 = vpop.f32.mrb[0].mxu0
      %926 = vmatprep.mubr.bf16.mxu0 0
      %927 = vmatmul.mubr.bf16.gmra.mrb[0].mxu0 %v787
      %v928 = vpop.f32.mrb[0].mxu0
      %v929 = vadd.f32 %v812, %v928
      %v930 = vpop.f32.mrb[0].mxu0
      %v931 = vpop.f32.mrb[0].mxu0
      %v932 = vadd.f32 %v812, %v931
      %v933 = vpop.f32.mrb[0].mxu0
      %934 = vmatprep.mubr.bf16.mxu0 0
      %935 = vmatmul.mubr.bf16.gmra.mrb[0].mxu0 %v788
      %v936 = vpop.f32.mrb[0].mxu0
      %v937 = vadd.f32 %v812, %v936
      %v938 = vpop.f32.mrb[0].mxu0
      %v939 = vpop.f32.mrb[0].mxu0
      %v940 = vadd.f32 %v812, %v939
      %v941 = vpop.f32.mrb[0].mxu0
      %942 = vmatprep.mubr.bf16.mxu0 0
      %943 = vmatmul.mubr.bf16.gmra.mrb[0].mxu0 %v789
      %v944 = vpop.f32.mrb[0].mxu0
      %v945 = vadd.f32 %v812, %v944
      %v946 = vpop.f32.mrb[0].mxu0
      %v947 = vpop.f32.mrb[0].mxu0
      %v948 = vadd.f32 %v812, %v947
      %v949 = vpop.f32.mrb[0].mxu0
      %950 = vmatprep.mubr.bf16.mxu0 0
      %951 = vmatmul.mubr.bf16.gmra.mrb[0].mxu0 %v790
      %v952 = vpop.f32.mrb[0].mxu0
      %v953 = vadd.f32 %v812, %v952
      %v954 = vpop.f32.mrb[0].mxu0
      %v955 = vpop.f32.mrb[0].mxu0
      %v956 = vadd.f32 %v812, %v955
      %v957 = vpop.f32.mrb[0].mxu0
      %958 = vdwg.mxu0
      %v959 = vsub.f32 0.0, %v897
      %v960 = vsub.f32 0.0, %v900
      %v961 = vsub.f32 0.0, %v905
      %v962 = vsub.f32 0.0, %v908
      %v963 = vsub.f32 0.0, %v913
      %v964 = vsub.f32 0.0, %v916
      %v965 = vsub.f32 0.0, %v921
      %v966 = vsub.f32 0.0, %v924
      %v967 = vsub.f32 0.0, %v929
      %v968 = vsub.f32 0.0, %v932
      %v969 = vsub.f32 0.0, %v937
      %v970 = vsub.f32 0.0, %v940
      %v971 = vsub.f32 0.0, %v945
      %v972 = vsub.f32 0.0, %v948
      %v973 = vsub.f32 0.0, %v953
      %v974 = vsub.f32 0.0, %v956
      %v975 = vmul.f32 %v959, 1.442695
      %v976 = vpow.pop %v975
      %v977 = vmul.f32 %v960, 1.442695
      %v978 = vpow.pop %v977
      %v979 = vmul.f32 %v961, 1.442695
      %v980 = vpow.pop %v979
      %v981 = vmul.f32 %v962, 1.442695
      %v982 = vpow.pop %v981
      %v983 = vmul.f32 %v963, 1.442695
      %v984 = vpow.pop %v983
      %v985 = vmul.f32 %v964, 1.442695
      %v986 = vpow.pop %v985
      %v987 = vmul.f32 %v965, 1.442695
      %v988 = vpow.pop %v987
      %v989 = vmul.f32 %v966, 1.442695
      %v990 = vpow.pop %v989
      %v991 = vmul.f32 %v967, 1.442695
      %v992 = vpow.pop %v991
      %v993 = vmul.f32 %v968, 1.442695
      %v994 = vpow.pop %v993
      %v995 = vmul.f32 %v969, 1.442695
      %v996 = vpow.pop %v995
      %v997 = vmul.f32 %v970, 1.442695
      %v998 = vpow.pop %v997
      %v999 = vmul.f32 %v971, 1.442695
      %v1000 = vpow.pop %v999
      %v1001 = vmul.f32 %v972, 1.442695
      %v1002 = vpow.pop %v1001
      %v1003 = vmul.f32 %v973, 1.442695
      %v1004 = vpow.pop %v1003
      %v1005 = vmul.f32 %v974, 1.442695
      %v1006 = vpow.pop %v1005
      %v1007 = vadd.f32 %v976, 1.0
      %v1008 = vadd.f32 %v978, 1.0
      %v1009 = vadd.f32 %v980, 1.0
      %v1010 = vadd.f32 %v982, 1.0
      %v1011 = vadd.f32 %v984, 1.0
      %v1012 = vadd.f32 %v986, 1.0
      %v1013 = vadd.f32 %v988, 1.0
      %v1014 = vadd.f32 %v990, 1.0
      %v1015 = vadd.f32 %v992, 1.0
      %v1016 = vadd.f32 %v994, 1.0
      %v1017 = vadd.f32 %v996, 1.0
      %v1018 = vadd.f32 %v998, 1.0
      %v1019 = vadd.f32 %v1000, 1.0
      %v1020 = vadd.f32 %v1002, 1.0
      %v1021 = vadd.f32 %v1004, 1.0
      %v1022 = vadd.f32 %v1006, 1.0
      %v1023 = vrcp.pop %v1007
      %v1024 = vrcp.pop %v1008
      %v1025 = vrcp.pop %v1009
      %v1026 = vrcp.pop %v1010
      %v1027 = vrcp.pop %v1011
      %v1028 = vrcp.pop %v1012
      %v1029 = vrcp.pop %v1013
      %v1030 = vrcp.pop %v1014
      %v1031 = vrcp.pop %v1015
      %v1032 = vrcp.pop %v1016
      %v1033 = vrcp.pop %v1017
      %v1034 = vrcp.pop %v1018
      %v1035 = vrcp.pop %v1019
      %v1036 = vrcp.pop %v1020
      %v1037 = vrcp.pop %v1021
      %v1038 = vrcp.pop %v1022
      %v1039 = vpack.c.bf16 %v1024, %v1023
      %v1040 = vpack.c.bf16 %v1026, %v1025
      %v1041 = vpack.c.bf16 %v1028, %v1027
      %v1042 = vpack.c.bf16 %v1030, %v1029
      %v1043 = vpack.c.bf16 %v1032, %v1031
      %v1044 = vpack.c.bf16 %v1034, %v1033
      %v1045 = vpack.c.bf16 %v1036, %v1035
      %v1046 = vpack.c.bf16 %v1038, %v1037
      %v1047 = vld [vmem:[%s5] sm:$0xf]
      %v1048 = vld [vmem:[%s5 + $0x4] sm:$0xf]
      %v1049 = vld [vmem:[%s5 + $0x8] sm:$0xf]
      %v1050 = vld [vmem:[%s5 + $0xc] sm:$0xf]
      %v1051 = vld [vmem:[%s5 + $0x10] sm:$0xf]
      %v1052 = vld [vmem:[%s5 + $0x14] sm:$0xf]
      %v1053 = vld [vmem:[%s5 + $0x18] sm:$0xf]
      %v1054 = vld [vmem:[%s5 + $0x1c] sm:$0xf]
      %v1055 = vld [vmem:[%s5 + $0x20] sm:$0xf]
      %v1056 = vld [vmem:[%s5 + $0x24] sm:$0xf]
      %v1057 = vld [vmem:[%s5 + $0x28] sm:$0xf]
      %v1058 = vld [vmem:[%s5 + $0x2c] sm:$0xf]
      %v1059 = vld [vmem:[%s5 + $0x30] sm:$0xf]
      %v1060 = vld [vmem:[%s5 + $0x34] sm:$0xf]
      %v1061 = vld [vmem:[%s5 + $0x38] sm:$0xf]
      %v1062 = vld [vmem:[%s5 + $0x3c] sm:$0xf]
      %v1063 = vld [vmem:[%s6] sm:$0x1]
      %v1065 = vlaneseq
      %v1066 = vshrl.u32 %v1065, 7
      %v1067 = vsub.s32 0, %v1066
      %v1068 = vrot.slane %v1063, %v1067
      %v1086 = vunpack.c.l.b16 %v1047
      %v1087 = vunpack.c.l.b16 %v1048
      %v1088 = vunpack.c.l.b16 %v1049
      %v1089 = vunpack.c.l.b16 %v1050
      %v1090 = vunpack.c.l.b16 %v1051
      %v1091 = vunpack.c.l.b16 %v1052
      %v1092 = vunpack.c.l.b16 %v1053
      %v1093 = vunpack.c.l.b16 %v1054
      %v1094 = vunpack.c.l.b16 %v1055
      %v1095 = vunpack.c.l.b16 %v1056
      %v1096 = vunpack.c.l.b16 %v1057
      %v1097 = vunpack.c.l.b16 %v1058
      %v1098 = vunpack.c.l.b16 %v1059
      %v1099 = vunpack.c.l.b16 %v1060
      %v1100 = vunpack.c.l.b16 %v1061
      %v1101 = vunpack.c.l.b16 %v1062
      %v1102 = vpack.c.b16 %v1087, %v1086
      %v1103 = vpack.c.b16 %v1089, %v1088
      %v1104 = vpack.c.b16 %v1091, %v1090
      %v1105 = vpack.c.b16 %v1093, %v1092
      %v1106 = vpack.c.b16 %v1095, %v1094
      %v1107 = vpack.c.b16 %v1097, %v1096
      %v1108 = vpack.c.b16 %v1099, %v1098
      %v1109 = vpack.c.b16 %v1101, %v1100
      %1118 = vmatprep.subr.bf16.mxu0 0
      %1119 = vmatpush1.bf16.msra.mxu0 %v1102
      %1120 = vmatprep.subr.bf16.mxu0 0
      %1121 = vmatpush1.bf16.msra.mxu0 %v1103
      %1122 = vmatprep.subr.bf16.mxu0 0
      %1123 = vmatpush1.bf16.msra.mxu0 %v1104
      %1124 = vmatprep.subr.bf16.mxu0 0
      %1125 = vmatpush1.bf16.msra.mxu0 %v1105
      %1126 = vmatprep.subr.bf16.mxu0 0
      %1127 = vmatpush1.bf16.msra.mxu0 %v1106
      %1128 = vmatprep.subr.bf16.mxu0 0
      %1129 = vmatpush1.bf16.msra.mxu0 %v1107
      %1130 = vmatprep.subr.bf16.mxu0 0
      %1131 = vmatpush1.bf16.msra.mxu0 %v1108
      %1132 = vmatprep.subr.bf16.mxu0 0
      %1133 = vmatpush1.bf16.msra.mxu0 %v1109
      %1134 = vmatprep.subr.bf16.mxu0 0
      %1135 = vmatpush1.bf16.msra.mxu0 0
      %1136 = vmatprep.subr.bf16.mxu0 0
      %1137 = vmatpush1.bf16.msra.mxu0 0
      %1138 = vmatprep.subr.bf16.mxu0 0
      %1139 = vmatpush1.bf16.msra.mxu0 0
      %1140 = vmatprep.subr.bf16.mxu0 0
      %1141 = vmatpush1.bf16.msra.mxu0 0
      %1142 = vmatprep.subr.bf16.mxu0 0
      %1143 = vmatpush1.bf16.msra.mxu0 0
      %1144 = vmatprep.subr.bf16.mxu0 0
      %1145 = vmatpush1.bf16.msra.mxu0 0
      %1146 = vmatprep.subr.bf16.mxu0 0
      %1147 = vmatpush1.bf16.msra.mxu0 0
      %1148 = vmatprep.subr.bf16.mxu0 0
      %1149 = vmatpush1.bf16.msra.mxu0 0
      %1150 = vmatprep.mubr.bf16.mxu0 0
      %1151 = vmatmul.mubr.bf16.gmra.mrb[0].mxu0 %v1039
      %v1152 = vpop.f32.mrb[0].mxu0
      %v1153 = vadd.f32 %v1068, %v1152
      %v1154 = vpop.f32.mrb[0].mxu0
      %v1155 = vpop.f32.mrb[0].mxu0
      %v1156 = vadd.f32 %v1068, %v1155
      %v1157 = vpop.f32.mrb[0].mxu0
      %1158 = vmatprep.mubr.bf16.mxu0 0
      %1159 = vmatmul.mubr.bf16.gmra.mrb[0].mxu0 %v1040
      %v1160 = vpop.f32.mrb[0].mxu0
      %v1161 = vadd.f32 %v1068, %v1160
      %v1162 = vpop.f32.mrb[0].mxu0
      %v1163 = vpop.f32.mrb[0].mxu0
      %v1164 = vadd.f32 %v1068, %v1163
      %v1165 = vpop.f32.mrb[0].mxu0
      %1166 = vmatprep.mubr.bf16.mxu0 0
      %1167 = vmatmul.mubr.bf16.gmra.mrb[0].mxu0 %v1041
      %v1168 = vpop.f32.mrb[0].mxu0
      %v1169 = vadd.f32 %v1068, %v1168
      %v1170 = vpop.f32.mrb[0].mxu0
      %v1171 = vpop.f32.mrb[0].mxu0
      %v1172 = vadd.f32 %v1068, %v1171
      %v1173 = vpop.f32.mrb[0].mxu0
      %1174 = vmatprep.mubr.bf16.mxu0 0
      %1175 = vmatmul.mubr.bf16.gmra.mrb[0].mxu0 %v1042
      %v1176 = vpop.f32.mrb[0].mxu0
      %v1177 = vadd.f32 %v1068, %v1176
      %v1178 = vpop.f32.mrb[0].mxu0
      %v1179 = vpop.f32.mrb[0].mxu0
      %v1180 = vadd.f32 %v1068, %v1179
      %v1181 = vpop.f32.mrb[0].mxu0
      %1182 = vmatprep.mubr.bf16.mxu0 0
      %1183 = vmatmul.mubr.bf16.gmra.mrb[0].mxu0 %v1043
      %v1184 = vpop.f32.mrb[0].mxu0
      %v1185 = vadd.f32 %v1068, %v1184
      %v1186 = vpop.f32.mrb[0].mxu0
      %v1187 = vpop.f32.mrb[0].mxu0
      %v1188 = vadd.f32 %v1068, %v1187
      %v1189 = vpop.f32.mrb[0].mxu0
      %1190 = vmatprep.mubr.bf16.mxu0 0
      %1191 = vmatmul.mubr.bf16.gmra.mrb[0].mxu0 %v1044
      %v1192 = vpop.f32.mrb[0].mxu0
      %v1193 = vadd.f32 %v1068, %v1192
      %v1194 = vpop.f32.mrb[0].mxu0
      %v1195 = vpop.f32.mrb[0].mxu0
      %v1196 = vadd.f32 %v1068, %v1195
      %v1197 = vpop.f32.mrb[0].mxu0
      %1198 = vmatprep.mubr.bf16.mxu0 0
      %1199 = vmatmul.mubr.bf16.gmra.mrb[0].mxu0 %v1045
      %v1200 = vpop.f32.mrb[0].mxu0
      %v1201 = vadd.f32 %v1068, %v1200
      %v1202 = vpop.f32.mrb[0].mxu0
      %v1203 = vpop.f32.mrb[0].mxu0
      %v1204 = vadd.f32 %v1068, %v1203
      %v1205 = vpop.f32.mrb[0].mxu0
      %1206 = vmatprep.mubr.bf16.mxu0 0
      %1207 = vmatmul.mubr.bf16.gmra.mrb[0].mxu0 %v1046
      %v1208 = vpop.f32.mrb[0].mxu0
      %v1209 = vadd.f32 %v1068, %v1208
      %v1210 = vpop.f32.mrb[0].mxu0
      %v1211 = vpop.f32.mrb[0].mxu0
      %v1212 = vadd.f32 %v1068, %v1211
      %v1213 = vpop.f32.mrb[0].mxu0
      %1214 = vdwg.mxu0
      %1215 = vst [vmem:[%s315] sm:$0xff] %v1153
      %1216 = vst [vmem:[%s315 + $0x8] sm:$0xff] %v1156
      %1217 = vst [vmem:[%s315 + $0x10] sm:$0xff] %v1161
      %1218 = vst [vmem:[%s315 + $0x18] sm:$0xff] %v1164
      %1219 = vst [vmem:[%s315 + $0x20] sm:$0xff] %v1169
      %1220 = vst [vmem:[%s315 + $0x28] sm:$0xff] %v1172
      %1221 = vst [vmem:[%s315 + $0x30] sm:$0xff] %v1177
      %1222 = vst [vmem:[%s315 + $0x38] sm:$0xff] %v1180
      %1223 = vst [vmem:[%s315 + $0x40] sm:$0xff] %v1185
      %1224 = vst [vmem:[%s315 + $0x48] sm:$0xff] %v1188
      %1225 = vst [vmem:[%s315 + $0x50] sm:$0xff] %v1193
      %1226 = vst [vmem:[%s315 + $0x58] sm:$0xff] %v1196
      %1227 = vst [vmem:[%s315 + $0x60] sm:$0xff] %v1201
      %1228 = vst [vmem:[%s315 + $0x68] sm:$0xff] %v1204
      %1229 = vst [vmem:[%s315 + $0x70] sm:$0xff] %v1209
      %1230 = vst [vmem:[%s315 + $0x78] sm:$0xff] %v1212
      %v1231 = vlaneseq
      %v1232 = vand.u32 %v1231, 127
      %vm1233 = vcmp.lt.s32.totalorder %v1232, 2
      %v1234 = vsel %vm1233, %v1153, -3.4e+38
      %v1235 = vsel %vm1233, %v1156, -3.4e+38
      %v1236 = vsel %vm1233, %v1161, -3.4e+38
      %v1237 = vsel %vm1233, %v1164, -3.4e+38
      %v1238 = vsel %vm1233, %v1169, -3.4e+38
      %v1239 = vsel %vm1233, %v1172, -3.4e+38
      %v1240 = vsel %vm1233, %v1177, -3.4e+38
      %v1241 = vsel %vm1233, %v1180, -3.4e+38
      %v1242 = vsel %vm1233, %v1185, -3.4e+38
      %v1243 = vsel %vm1233, %v1188, -3.4e+38
      %v1244 = vsel %vm1233, %v1193, -3.4e+38
      %v1245 = vsel %vm1233, %v1196, -3.4e+38
      %v1246 = vsel %vm1233, %v1201, -3.4e+38
      %v1247 = vsel %vm1233, %v1204, -3.4e+38
      %v1248 = vsel %vm1233, %v1209, -3.4e+38
      %v1249 = vsel %vm1233, %v1212, -3.4e+38
      %1250 = vmax.xlane.f32.xlu0 %v1234
      %v1251 = vpop.xlane.xlu0 %1250
      %1252 = vmax.xlane.f32.xlu0 %v1235
      %v1253 = vpop.xlane.xlu0 %1252
      %1254 = vmax.xlane.f32.xlu0 %v1236
      %v1255 = vpop.xlane.xlu0 %1254
      %1256 = vmax.xlane.f32.xlu0 %v1237
      %v1257 = vpop.xlane.xlu0 %1256
      %1258 = vmax.xlane.f32.xlu0 %v1238
      %v1259 = vpop.xlane.xlu0 %1258
      %1260 = vmax.xlane.f32.xlu0 %v1239
      %v1261 = vpop.xlane.xlu0 %1260
      %1262 = vmax.xlane.f32.xlu0 %v1240
      %v1263 = vpop.xlane.xlu0 %1262
      %1264 = vmax.xlane.f32.xlu0 %v1241
      %v1265 = vpop.xlane.xlu0 %1264
      %1266 = vmax.xlane.f32.xlu0 %v1242
      %v1267 = vpop.xlane.xlu0 %1266
      %1268 = vmax.xlane.f32.xlu0 %v1243
      %v1269 = vpop.xlane.xlu0 %1268
      %1270 = vmax.xlane.f32.xlu0 %v1244
      %v1271 = vpop.xlane.xlu0 %1270
      %1272 = vmax.xlane.f32.xlu0 %v1245
      %v1273 = vpop.xlane.xlu0 %1272
      %1274 = vmax.xlane.f32.xlu0 %v1246
      %v1275 = vpop.xlane.xlu0 %1274
      %1276 = vmax.xlane.f32.xlu0 %v1247
      %v1277 = vpop.xlane.xlu0 %1276
      %1278 = vmax.xlane.f32.xlu0 %v1248
      %v1279 = vpop.xlane.xlu0 %1278
      %1280 = vmax.xlane.f32.xlu0 %v1249
      %v1281 = vpop.xlane.xlu0 %1280
      %vm1282 = vcmp.eq.f32.partialorder %v1234, %v1251
      %vm1283 = vcmp.eq.f32.partialorder %v1235, %v1253
      %vm1284 = vcmp.eq.f32.partialorder %v1236, %v1255
      %vm1285 = vcmp.eq.f32.partialorder %v1237, %v1257
      %vm1286 = vcmp.eq.f32.partialorder %v1238, %v1259
      %vm1287 = vcmp.eq.f32.partialorder %v1239, %v1261
      %vm1288 = vcmp.eq.f32.partialorder %v1240, %v1263
      %vm1289 = vcmp.eq.f32.partialorder %v1241, %v1265
      %vm1290 = vcmp.eq.f32.partialorder %v1242, %v1267
      %vm1291 = vcmp.eq.f32.partialorder %v1243, %v1269
      %vm1292 = vcmp.eq.f32.partialorder %v1244, %v1271
      %vm1293 = vcmp.eq.f32.partialorder %v1245, %v1273
      %vm1294 = vcmp.eq.f32.partialorder %v1246, %v1275
      %vm1295 = vcmp.eq.f32.partialorder %v1247, %v1277
      %vm1296 = vcmp.eq.f32.partialorder %v1248, %v1279
      %vm1297 = vcmp.eq.f32.partialorder %v1249, %v1281
      %v1298 = vcvt.s32.f32 %v1232
      %v1299 = vsel %vm1282, %v1298, 128.0
      %v1300 = vsel %vm1283, %v1298, 128.0
      %v1301 = vsel %vm1284, %v1298, 128.0
      %v1302 = vsel %vm1285, %v1298, 128.0
      %v1303 = vsel %vm1286, %v1298, 128.0
      %v1304 = vsel %vm1287, %v1298, 128.0
      %v1305 = vsel %vm1288, %v1298, 128.0
      %v1306 = vsel %vm1289, %v1298, 128.0
      %v1307 = vsel %vm1290, %v1298, 128.0
      %v1308 = vsel %vm1291, %v1298, 128.0
      %v1309 = vsel %vm1292, %v1298, 128.0
      %v1310 = vsel %vm1293, %v1298, 128.0
      %v1311 = vsel %vm1294, %v1298, 128.0
      %v1312 = vsel %vm1295, %v1298, 128.0
      %v1313 = vsel %vm1296, %v1298, 128.0
      %v1314 = vsel %vm1297, %v1298, 128.0
      %1315 = vmin.xlane.f32.xlu0 %v1299
      %v1316 = vpop.xlane.xlu0 %1315
      %1317 = vmin.xlane.f32.xlu0 %v1300
      %v1318 = vpop.xlane.xlu0 %1317
      %1319 = vmin.xlane.f32.xlu0 %v1301
      %v1320 = vpop.xlane.xlu0 %1319
      %1321 = vmin.xlane.f32.xlu0 %v1302
      %v1322 = vpop.xlane.xlu0 %1321
      %1323 = vmin.xlane.f32.xlu0 %v1303
      %v1324 = vpop.xlane.xlu0 %1323
      %1325 = vmin.xlane.f32.xlu0 %v1304
      %v1326 = vpop.xlane.xlu0 %1325
      %1327 = vmin.xlane.f32.xlu0 %v1305
      %v1328 = vpop.xlane.xlu0 %1327
      %1329 = vmin.xlane.f32.xlu0 %v1306
      %v1330 = vpop.xlane.xlu0 %1329
      %1331 = vmin.xlane.f32.xlu0 %v1307
      %v1332 = vpop.xlane.xlu0 %1331
      %1333 = vmin.xlane.f32.xlu0 %v1308
      %v1334 = vpop.xlane.xlu0 %1333
      %1335 = vmin.xlane.f32.xlu0 %v1309
      %v1336 = vpop.xlane.xlu0 %1335
      %1337 = vmin.xlane.f32.xlu0 %v1310
      %v1338 = vpop.xlane.xlu0 %1337
      %1339 = vmin.xlane.f32.xlu0 %v1311
      %v1340 = vpop.xlane.xlu0 %1339
      %1341 = vmin.xlane.f32.xlu0 %v1312
      %v1342 = vpop.xlane.xlu0 %1341
      %1343 = vmin.xlane.f32.xlu0 %v1313
      %v1344 = vpop.xlane.xlu0 %1343
      %1345 = vmin.xlane.f32.xlu0 %v1314
      %v1346 = vpop.xlane.xlu0 %1345
      %v1347 = vcvt.f32.s32.to.zero.pseudo %v1316
      %v1348 = vcvt.f32.s32.to.zero.pseudo %v1318
      %v1349 = vcvt.f32.s32.to.zero.pseudo %v1320
      %v1350 = vcvt.f32.s32.to.zero.pseudo %v1322
      %v1351 = vcvt.f32.s32.to.zero.pseudo %v1324
      %v1352 = vcvt.f32.s32.to.zero.pseudo %v1326
      %v1353 = vcvt.f32.s32.to.zero.pseudo %v1328
      %v1354 = vcvt.f32.s32.to.zero.pseudo %v1330
      %v1355 = vcvt.f32.s32.to.zero.pseudo %v1332
      %v1356 = vcvt.f32.s32.to.zero.pseudo %v1334
      %v1357 = vcvt.f32.s32.to.zero.pseudo %v1336
      %v1358 = vcvt.f32.s32.to.zero.pseudo %v1338
      %v1359 = vcvt.f32.s32.to.zero.pseudo %v1340
      %v1360 = vcvt.f32.s32.to.zero.pseudo %v1342
      %v1361 = vcvt.f32.s32.to.zero.pseudo %v1344
      %v1362 = vcvt.f32.s32.to.zero.pseudo %v1346
      %vm1363 = vcmask 7168
      %1364 = vst.msk [vmem:[%s321] sm:$0xff] %vm1363, %v1347
      %1365 = vst.msk [vmem:[%s321 + $0x8] sm:$0xff] %vm1363, %v1348
      %1366 = vst.msk [vmem:[%s321 + $0x10] sm:$0xff] %vm1363, %v1349
      %1367 = vst.msk [vmem:[%s321 + $0x18] sm:$0xff] %vm1363, %v1350
      %1368 = vst.msk [vmem:[%s321 + $0x20] sm:$0xff] %vm1363, %v1351
      %1369 = vst.msk [vmem:[%s321 + $0x28] sm:$0xff] %vm1363, %v1352
      %1370 = vst.msk [vmem:[%s321 + $0x30] sm:$0xff] %vm1363, %v1353
      %1371 = vst.msk [vmem:[%s321 + $0x38] sm:$0xff] %vm1363, %v1354
      %1372 = vst.msk [vmem:[%s321 + $0x40] sm:$0xff] %vm1363, %v1355
      %1373 = vst.msk [vmem:[%s321 + $0x48] sm:$0xff] %vm1363, %v1356
      %1374 = vst.msk [vmem:[%s321 + $0x50] sm:$0xff] %vm1363, %v1357
      %1375 = vst.msk [vmem:[%s321 + $0x58] sm:$0xff] %vm1363, %v1358
      %1376 = vst.msk [vmem:[%s321 + $0x60] sm:$0xff] %vm1363, %v1359
      %1377 = vst.msk [vmem:[%s321 + $0x68] sm:$0xff] %vm1363, %v1360
      %1378 = vst.msk [vmem:[%s321 + $0x70] sm:$0xff] %vm1363, %v1361
      %1379 = vst.msk [vmem:[%s321 + $0x78] sm:$0xff] %vm1363, %v1362
      %s1380 = smul.u32 16, %s20
      %p1381 = scmp.lt.s32.totalorder %s1380, 31
      %s1382 = scalar_select %p1381, %s1380, 31
      %s1383 = smul.addr %s1382, 8
      %s1384 = scalar_lea.vmem %s7, %s1383
      %s1385 = smul.u32 16, %s20
      %p1386 = scmp.lt.s32.totalorder %s1385, 31
      %s1387 = scalar_select %p1386, %s1385, 31
      %s1388 = smul.addr %s1387, 8
      %s1389 = scalar_lea.vmem %s8, %s1388
      // Predicated region
      $region49: #{dqn_forward.1} parent=47 // pred_check
        %p1390 = pneg %p190
      $region50: #{dqn_forward.1} parent=47 // pred_check_branch
        %1392 = sbr.rel (%p1390) target = $region52
      $region51: #{dqn_forward.1} parent=47 // pred_region
        %s1393 = smul.u32 16, %s20
      $region52: #{dqn_forward.1} parent=47 // pred_fallthru
        _
      // Predicated region
      $region53: #{dqn_forward.1} parent=47 // pred_check
        %p1394 = pneg %p216
      $region54: #{dqn_forward.1} parent=47 // pred_check_branch
        %1396 = sbr.rel (%p1394) target = $region56
      $region55: #{dqn_forward.1} parent=47 // pred_region
        %s1397 = smul.u32 16, %s20
      $region56: #{dqn_forward.1} parent=47 // pred_fallthru
        _
    $region48: #{dqn_forward.1} parent=5 // pred_fallthru
      _
    %p1398 = scmp.le.s32.totalorder 2, %s15
    // Predicated region
    $region57: #{dqn_forward.1} parent=5 // pred_check
      %p1399 = pneg %p1398
    $region58: #{dqn_forward.1} parent=5 // pred_check_branch
      %1401 = sbr.rel (%p1399) target = $region60
    $region59: #{dqn_forward.1} parent=5 // pred_region
      %s1402 = ssub.s32 %s15, 2
      // Predicated region
      $region61: #{dqn_forward.1} parent=59 // pred_check
        %p1403 = pneg %p196
      $region62: #{dqn_forward.1} parent=59 // pred_check_branch
        %1405 = sbr.rel (%p1403) target = $region64
      $region63: #{dqn_forward.1} parent=59 // pred_region
        %s1406 = smul.u32 16, %s21
        %p1407 = scmp.lt.s32.totalorder %s1406, 31
        %s1408 = scalar_select %p1407, %s1406, 31
        %s1409 = smul.addr %s1408, 8
        %s1410 = scalar_lea.vmem %s7, %s1409
      $region64: #{dqn_forward.1} parent=59 // pred_fallthru
        _
      // Predicated region
      $region65: #{dqn_forward.1} parent=59 // pred_check
        %p1411 = pneg %p222
      $region66: #{dqn_forward.1} parent=59 // pred_check_branch
        %1413 = sbr.rel (%p1411) target = $region68
      $region67: #{dqn_forward.1} parent=59 // pred_region
        %s1414 = smul.u32 16, %s21
        %p1415 = scmp.lt.s32.totalorder %s1414, 31
        %s1416 = scalar_select %p1415, %s1414, 31
        %s1417 = smul.addr %s1416, 8
        %s1418 = scalar_lea.vmem %s8, %s1417
      $region68: #{dqn_forward.1} parent=59 // pred_fallthru
        _
    $region60: #{dqn_forward.1} parent=5 // pred_fallthru
      _
  $region6: #{dqn_forward.1} parent=0 // loop_footer
    %s19 = sadd.s32 1, %s15
  $region7: #{dqn_forward.1} parent=0 // loop_footer_branch
    %14 = sbr.rel target = $region3
  $region8: #{dqn_forward.1} parent=0 // loop_exit
    _

</llo_original>
